<compile_context>
chip_gen: v5e
topology: v5e:2x2
jax: 0.10.0
libtpu: 0.0.40
codegen_flags: <defaults>
</compile_context>

<pallas_src>
import jax
import jax.numpy as jnp
from jax import lax
from jax.experimental import pallas as pl
from jax.experimental.pallas import tpu as pltpu


def _round_up(a: int, m: int) -> int:
    return (a + m - 1) // m * m


def _target_block_bytes() -> int:
    """Per-buffer x-block size target, by TPU generation."""
    try:
        kind = jax.devices()[0].device_kind.lower()
    except Exception:
        kind = ""
    if "v5" in kind:
        return 2 << 20   # v5e: modest HBM BW, 16 MiB default scoped VMEM
    if "v6" in kind:
        return 4 << 20
    if "v7" in kind:
        return 8 << 20   # v7x: 3.2 TB/s HBM needs big blocks; 64 MiB VMEM
    return 4 << 20


def _linear_kernel(x_ref, w_ref, b_ref, o_ref):
    # x_ref: (TB, K) VMEM    w_ref: (K, N) VMEM (resident; constant index_map)
    # b_ref: (1,)    SMEM    o_ref: (TB, N) VMEM
    # K sits on x's lane axis and w's sublane axis -> natural MXU feed,
    # no in-kernel transposes.
    y = jnp.dot(x_ref[...], w_ref[...], preferred_element_type=jnp.float32)
    o_ref[...] = (y + b_ref[0]).astype(o_ref.dtype)


def _linear_pallas(x, w, bias1):
    """y[i, :] = x[i, :] @ w + bias  for 2-D x (R, K) and w (K, N)."""
    R, K = x.shape
    _, N = w.shape
    itemsize = jnp.dtype(x.dtype).itemsize

    # --- tile sizing -------------------------------------------------------
    block_bytes = _target_block_bytes()
    k_vmem = _round_up(K, 128)                       # lane padding in VMEM
    tb = max(8, (block_bytes // (k_vmem * itemsize)) // 8 * 8)
    # Keep >= ~4 grid steps when the problem allows it (megacore sharding on
    # v7x + pipelining); never below one sublane.
    tb = min(tb, max(8, _round_up(pl.cdiv(R, 4), 8)))
    grid = (pl.cdiv(R, tb),)                         # no padding: partial tail tile

    # --- explicit VMEM budget (double-buffered in/out + resident weight) ----
    vmem_bytes = (
        2 * tb * k_vmem * itemsize                       # x double buffer
        + 2 * tb * _round_up(N, 128) * itemsize          # out double buffer
        + 2 * _round_up(K, 8) * _round_up(N, 128) * itemsize  # weight
        + (4 << 20)                                      # slack
    )
    vmem_bytes = max(int(vmem_bytes), 16 << 20)

    cost = pl.CostEstimate(
        flops=2 * R * K * N,
        transcendentals=0,
        bytes_accessed=(R * K + K * N + R * N) * itemsize,
    )

    return pl.pallas_call(
        _linear_kernel,
        out_shape=jax.ShapeDtypeStruct((R, N), x.dtype),
        grid_spec=pltpu.PrefetchScalarGridSpec(
            num_scalar_prefetch=0,
            grid=grid,
            in_specs=[
                # x: one batch tile per grid step (pipelined HBM<->VMEM).
                pl.BlockSpec((tb, K), lambda i: (i, 0)),
                # weight: constant block index -> resident, no re-DMA.
                pl.BlockSpec((K, N), lambda i: (0, 0)),
                # bias: single scalar in SMEM.
                pl.BlockSpec(memory_space=pltpu.MemorySpace.SMEM),
            ],
            out_specs=pl.BlockSpec((tb, N), lambda i: (i, 0)),
        ),
        compiler_params=pltpu.CompilerParams(
            dimension_semantics=("parallel",),
            vmem_limit_bytes=vmem_bytes,
        ),
        cost_estimate=cost,
    )(x, w, bias1)


def logistic_regression_forward(x, weight, bias, *, force_pallas=False):
    """Pallas forward of LogisticRegression: y = x @ W^T + b.

    x:      (B, D) float
    weight: (1, D) float   (PyTorch nn.Linear weight layout)
    bias:   (1,)   float
    returns (B, 1)
    """
    B, D = x.shape
    weight = jnp.asarray(weight, x.dtype).reshape(1, D)
    bias1 = jnp.asarray(bias, x.dtype).reshape((1,))

    # Small-problem bypass: a single-tile pallas_call is dominated by fixed
    # launch/pipeline costs; XLA fuses this trivially.
    if not force_pallas and B * D < (1 << 20):
        return x @ weight.T + bias1

    r = 128 // D if (D <= 128 and 128 % D == 0) else 0
    if r >= 1 and B % r == 0:
        # Lane-packed path: pack r batch rows per 128-lane row (free reshape),
        # contract against a (128, r) packed weight.
        M = B // r
        x_packed = x.reshape(M, r * D)                       # (M, 128), no copy
        w_packed = jnp.kron(jnp.eye(r, dtype=x.dtype), weight).T   # (128, r)
        out = _linear_pallas(x_packed, w_packed, bias1)      # (M, r)
        return out.reshape(B, 1)                             # out[m, k] = y[m*r + k]

    # Generic path (e.g. D >= 128 or D not dividing 128): x as LHS, (D, 1) RHS.
    return _linear_pallas(x, weight.T, bias1)                # (B, 1)


if __name__ == "__main__":
    key = jax.random.PRNGKey(0)
    k1x, k1w, k1b, k2x, k2w, k2b, k3x, k3w, k3b = jax.random.split(key, 9)

    def make_case(kx, kw, kb, batch, num_inputs):
        bound = 1.0 / (num_inputs ** 0.5)
        w = jax.random.uniform(kw, (1, num_inputs), jnp.float32, -bound, bound)
        b = jax.random.uniform(kb, (1,), jnp.float32, -bound, bound)
        xx = jax.random.normal(kx, (batch, num_inputs), jnp.float32)
        return xx, w, b

    def reference(xx, w, b):
        return jnp.matmul(xx, w.T, precision=lax.Precision.HIGHEST) + b

    # Case 1: lane-packed Pallas path (D=32 -> 4 rows per 128-lane row),
    # multiple grid steps with a partial tail tile.
    x1, w1, b1 = make_case(k1x, k1w, k1b, batch=2064, num_inputs=32)
    y1 = jax.block_until_ready(logistic_regression_forward(x1, w1, b1, force_pallas=True))
    assert y1.shape == (2064, 1)
    assert jnp.allclose(y1, reference(x1, w1, b1), atol=1e-3, rtol=1e-3)

    # Case 2: generic Pallas path (D=200 does not divide 128), partial tail tile,
    # batch not a multiple of 8.
    x2, w2, b2 = make_case(k2x, k2w, k2b, batch=1030, num_inputs=200)
    y2 = jax.block_until_ready(logistic_regression_forward(x2, w2, b2, force_pallas=True))
    assert y2.shape == (1030, 1)
    assert jnp.allclose(y2, reference(x2, w2, b2), atol=1e-3, rtol=1e-3)

    # Case 3: tiny problem -> small-problem bypass (plain JAX), same semantics.
    x3, w3, b3 = make_case(k3x, k3w, k3b, batch=8, num_inputs=32)
    y3 = jax.block_until_ready(logistic_regression_forward(x3, w3, b3))
    assert y3.shape == (8, 1)
    assert jnp.allclose(y3, reference(x3, w3, b3), atol=1e-4, rtol=1e-4)

    print("KERNEL_OK")
</pallas_src>

<mosaic_0001>
module attributes {stable_mosaic.version = 11 : i64} {
  func.func @_linear_kernel(%arg0: i32, %arg1: memref<136x128xf32, #tpu.memory_space<vmem>>, %arg2: memref<128x4xf32, #tpu.memory_space<vmem>>, %arg3: memref<1xf32, #tpu.memory_space<smem>>, %arg4: memref<136x4xf32, #tpu.memory_space<vmem>>) attributes {dimension_semantics = [#tpu.dimension_semantics<parallel>], iteration_bounds = array<i64: 4>, scalar_prefetch = 0 : i64, scratch_operands = 0 : i64, tpu.core_type = #tpu.core_type<tc>, window_params = [{transform_indices = @transform_0, window_bounds = array<i64: 136, 128>}, {pipeline_mode = #tpu.pipeline_mode<synchronous>, transform_indices = @transform_1, window_bounds = array<i64: 128, 4>}, {transform_indices = @transform_2, window_bounds = array<i64: 1>}, {transform_indices = @transform_3, window_bounds = array<i64: 136, 4>}]} {
    %c0 = arith.constant 0 : index
    %c0_0 = arith.constant 0 : index
    %0 = vector.load %arg1[%c0, %c0_0] : memref<136x128xf32, #tpu.memory_space<vmem>>, vector<136x128xf32>
    %c0_1 = arith.constant 0 : index
    %c0_2 = arith.constant 0 : index
    %1 = vector.load %arg2[%c0_1, %c0_2] : memref<128x4xf32, #tpu.memory_space<vmem>>, vector<128x4xf32>
    %cst = arith.constant dense<0.000000e+00> : vector<136x4xf32>
    %2 = tpu.matmul %0, %1, %cst {dimension_numbers = #tpu.dot_dimension_numbers<[1], [0], [0], [1], [0, 0, 1, 1], [], []>} : vector<136x128xf32>, vector<128x4xf32>, vector<136x4xf32> -> vector<136x4xf32>
    %c0_3 = arith.constant 0 : index
    %3 = memref.load %arg3[%c0_3] : memref<1xf32, #tpu.memory_space<smem>>
    %4 = vector.broadcast %3 : f32 to vector<136x4xf32>
    %5 = arith.addf %2, %4 : vector<136x4xf32>
    %c0_4 = arith.constant 0 : index
    %c0_5 = arith.constant 0 : index
    %6 = vector.load %arg4[%c0_4, %c0_5] : memref<136x4xf32, #tpu.memory_space<vmem>>, vector<136x4xf32>
    tpu.vector_store %arg4[%c0_4, %c0_5], %5 {strides = array<i32>} : memref<136x4xf32, #tpu.memory_space<vmem>>, vector<136x4xf32>,
    return
  }
  func.func @transform_0(%arg0: i32) -> (i32, i32) {
    %c0_i32 = arith.constant 0 : i32
    %c0_i32_0 = arith.constant 0 : i32
    return %arg0, %c0_i32 : i32, i32
  }
  func.func @transform_1(%arg0: i32) -> (i32, i32) {
    %c0_i32 = arith.constant 0 : i32
    %c0_i32_0 = arith.constant 0 : i32
    %c0_i32_1 = arith.constant 0 : i32
    return %c0_i32, %c0_i32_0 : i32, i32
  }
  func.func @transform_2(%arg0: i32) -> i32 {
    %c0_i32 = arith.constant 0 : i32
    %c0_i32_0 = arith.constant 0 : i32
    return %c0_i32 : i32
  }
  func.func @transform_3(%arg0: i32) -> (i32, i32) {
    %c0_i32 = arith.constant 0 : i32
    %c0_i32_0 = arith.constant 0 : i32
    return %arg0, %c0_i32 : i32, i32
  }
}

</mosaic_0001>

<llo_original>
// kernel: tpu_custom_call.1
$region0: #{tpu_custom_call.1}
  #allocation0 [shape = 'u32[]', space=smem, size = 0x4, offset = 0x4, fixed_abs, tag = 'smem constant byte address 0x4 - core index']
  #allocation1 [shape = 'u32[72,128]{1,0:T(1,128)}', space=vmem, size = 0x9000, scoped, tag = 'internal scratch']
  #allocation2 [shape = 'f32[1]{0:T(128)S(6)}', space=smem, size = 0x200, scoped, tag = 'scoped memory for tpu_custom_call.1']
  %s0 = inlined_call_operand.hbm [shape: f32[516,128], index: 0, kind: input, shape index: {}]
  %s1 = inlined_call_operand.vmem [shape: f32[128,4], index: 1, kind: input, shape index: {}]
  %s2 = inlined_call_operand.<no memory space> [shape: f32[1], index: 2, kind: input, shape index: {}]
  %s3 = inlined_call_operand.vmem [shape: f32[516,4], index: 3, kind: output, shape index: {}]
  %s4 = sld [smem:[#allocation0]]
  $region97: #{tpu_custom_call.1} parent=0
    _
  %s6 = ssub.s32 1, %s4
  %s7 = scalar_select 0, %s6, %s4
  %8 = sst [smem:[#allocation2]] %s2
  $region1: #{tpu_custom_call.1} parent=0
    #allocation3 [shape = 'u8[139264]{0}', space=vmem, size = 0x22000, scoped, tag = 'input window, operand 0']
    #allocation4 [shape = 's32[2]{0}', space=sflag, size = 0x8, scoped, tag = 'scoped memory for tpu_custom_call.1']
    #allocation5 [shape = 'u8[139264]{0}', space=vmem, size = 0x22000, scoped, tag = 'output window, operand 0']
    %9 = vsyncpa [#allocation4], 0
    %s10 = scalar_lea.sflag [#allocation4], 1
    %11 = vsyncpa %s10, 0
    loop: start=0, step=1, limit=6
    $region2: #{tpu_custom_call.1} parent=1 // loop_pre_header
      _
    $region3: #{tpu_custom_call.1} parent=1 // loop_header
      %s13 = sphi 0, %s17
      %p14 = scmp.ge.s32.totalorder %s13, 6
      %s23 = sphi 0, %s25
      %s26 = sphi 0, %s23
      %s27 = sphi 0, %s26
      %s43 = sphi 0, %s27
      %s47 = sphi 0, %s47
      %s49 = sphi 0, %s47
      %s50 = sphi 0, %s49
      %s64 = sphi 0, %s50
      %s68 = sphi 0, %s68
      %s70 = sphi 0, %s68
      %s71 = sphi 0, %s70
      %s85 = sphi 0, %s71
      %s91 = sphi 0, %s93
      %s94 = sphi 0, %s91
      %s95 = sphi 0, %s94
      %s111 = sphi 0, %s95
    $region4: #{tpu_custom_call.1} parent=1 // loop_header_branch
      %16 = sbr.rel (%p14) target = $region8
    $region5: #{tpu_custom_call.1} parent=1 // loop_body
      %s18 = ssub.s32 %s13, 1
      %s19 = ssub.s32 %s13, 2
      %s20 = sadd.s32 %s13, 1
      %s21 = ssub.s32 %s13, %s20
      %p22 = scmp.eq.s32.totalorder %s21, 0
      %s24 = sadd.s32 %s23, 1
      %s25 = scalar_select %p22, %s23, %s24
      %p28 = pneg %p22
      %p29 = scmp.eq.s32.totalorder %s13, 3
      %p30 = por %p28, %p29
      %p31 = scmp.ne.s32.totalorder %s23, %s26
      %p32 = scmp.eq.s32.totalorder %s13, 0
      %p33 = por %p31, %p32
      %p34 = scmp.ne.s32.totalorder %s23, %s26
      %p35 = scmp.eq.s32.totalorder %s18, 3
      %p36 = por %p34, %p35
      %p37 = scmp.ne.s32.totalorder %s26, %s27
      %p38 = scmp.eq.s32.totalorder %s18, 0
      %p39 = por %p37, %p38
      %p40 = scmp.ne.s32.totalorder %s26, %s27
      %p41 = scmp.eq.s32.totalorder %s19, 3
      %p42 = por %p40, %p41
      %p44 = scmp.ne.s32.totalorder %s27, %s43
      %p45 = scmp.eq.s32.totalorder %s19, 0
      %p46 = por %p44, %p45
      %s48 = sadd.s32 %s47, 1
      %p51 = scmp.eq.s32.totalorder %s13, 3
      %p52 = scmp.ne.s32.totalorder %s47, %s49
      %p53 = scmp.eq.s32.totalorder %s13, 0
      %p54 = por %p52, %p53
      %p55 = scmp.ne.s32.totalorder %s47, %s49
      %p56 = scmp.eq.s32.totalorder %s18, 3
      %p57 = por %p55, %p56
      %p58 = scmp.ne.s32.totalorder %s49, %s50
      %p59 = scmp.eq.s32.totalorder %s18, 0
      %p60 = por %p58, %p59
      %p61 = scmp.ne.s32.totalorder %s49, %s50
      %p62 = scmp.eq.s32.totalorder %s19, 3
      %p63 = por %p61, %p62
      %p65 = scmp.ne.s32.totalorder %s50, %s64
      %p66 = scmp.eq.s32.totalorder %s19, 0
      %p67 = por %p65, %p66
      %s69 = sadd.s32 %s68, 1
      %p72 = scmp.eq.s32.totalorder %s13, 3
      %p73 = scmp.ne.s32.totalorder %s68, %s70
      %p74 = scmp.eq.s32.totalorder %s13, 0
      %p75 = por %p73, %p74
      %p76 = scmp.ne.s32.totalorder %s68, %s70
      %p77 = scmp.eq.s32.totalorder %s18, 3
      %p78 = por %p76, %p77
      %p79 = scmp.ne.s32.totalorder %s70, %s71
      %p80 = scmp.eq.s32.totalorder %s18, 0
      %p81 = por %p79, %p80
      %p82 = scmp.ne.s32.totalorder %s70, %s71
      %p83 = scmp.eq.s32.totalorder %s19, 3
      %p84 = por %p82, %p83
      %p86 = scmp.ne.s32.totalorder %s71, %s85
      %p87 = scmp.eq.s32.totalorder %s19, 0
      %p88 = por %p86, %p87
      %s89 = ssub.s32 %s13, %s20
      %p90 = scmp.eq.s32.totalorder %s89, 0
      %s92 = sadd.s32 %s91, 1
      %s93 = scalar_select %p90, %s91, %s92
      %p96 = pneg %p90
      %p97 = scmp.eq.s32.totalorder %s13, 3
      %p98 = por %p96, %p97
      %p99 = scmp.ne.s32.totalorder %s91, %s94
      %p100 = scmp.eq.s32.totalorder %s13, 0
      %p101 = por %p99, %p100
      %p102 = scmp.ne.s32.totalorder %s91, %s94
      %p103 = scmp.eq.s32.totalorder %s18, 3
      %p104 = por %p102, %p103
      %p105 = scmp.ne.s32.totalorder %s94, %s95
      %p106 = scmp.eq.s32.totalorder %s18, 0
      %p107 = por %p105, %p106
      %p108 = scmp.ne.s32.totalorder %s94, %s95
      %p109 = scmp.eq.s32.totalorder %s19, 3
      %p110 = por %p108, %p109
      %p112 = scmp.ne.s32.totalorder %s95, %s111
      %p113 = scmp.eq.s32.totalorder %s19, 0
      %p114 = por %p112, %p113
      %p115 = scmp.le.s32.totalorder 1, %s13
      %p116 = scmp.lt.s32.totalorder %s13, 5
      %p117 = pnand %p115, %p116
      %p118 = pneg %p117
      // Predicated region
      $region9: #{tpu_custom_call.1} parent=5 // pred_check
        _
      $region10: #{tpu_custom_call.1} parent=5 // pred_check_branch
        %120 = sbr.rel (%p117) target = $region12
      $region11: #{tpu_custom_call.1} parent=5 // pred_region
        %s121 = ssub.s32 %s13, 1
        // Predicated region
        $region13: #{tpu_custom_call.1} parent=11 // pred_check
          %p122 = pneg %p60
        $region14: #{tpu_custom_call.1} parent=11 // pred_check_branch
          %124 = sbr.rel (%p122) target = $region16
        $region15: #{tpu_custom_call.1} parent=11 // pred_region
          _
        $region16: #{tpu_custom_call.1} parent=11 // pred_fallthru
          _
        // Predicated region
        $region17: #{tpu_custom_call.1} parent=11 // pred_check
          %p125 = pneg %p81
        $region18: #{tpu_custom_call.1} parent=11 // pred_check_branch
          %127 = sbr.rel (%p125) target = $region20
        $region19: #{tpu_custom_call.1} parent=11 // pred_region
          _
        $region20: #{tpu_custom_call.1} parent=11 // pred_fallthru
          _
      $region12: #{tpu_custom_call.1} parent=5 // pred_fallthru
        _
      %p128 = scmp.lt.s32.totalorder %s13, 4
      // Predicated region
      $region21: #{tpu_custom_call.1} parent=5 // pred_check
        %p129 = pneg %p128
      $region22: #{tpu_custom_call.1} parent=5 // pred_check_branch
        %131 = sbr.rel (%p129) target = $region24
      $region23: #{tpu_custom_call.1} parent=5 // pred_region
        // Predicated region
        $region25: #{tpu_custom_call.1} parent=23 // pred_check
          %p132 = pneg %p33
        $region26: #{tpu_custom_call.1} parent=23 // pred_check_branch
          %134 = sbr.rel (%p132) target = $region28
        $region27: #{tpu_custom_call.1} parent=23 // pred_region
          %s135 = sand.u32 %s23, 1
          %s136 = scalar_lea.sflag [#allocation4], %s135
          %s137 = sand.u32 %s23, 1
          %s138 = smul.addr %s137, 136
          %s139 = scalar_lea.vmem [#allocation3], %s138
          %s140 = smul.u32 17, %s13
          %s141 = ssub.s32 65, %s140
          %p142 = scmp.lt.s32.totalorder %s141, 17
          %s143 = scalar_select %p142, %s141, 17
          %s144 = smul.u32 8, %s143
          %s145 = ssub.s32 136, %s144
          %s146 = sshll.u32 %s145, 4
          %147 = vsyncadd %s136, %s146
          %p148 = scmp.ne.s32.totalorder 0, %s144
          %s149 = smul.addr %s140, 8
          %s150 = scalar_lea.hbm %s0, %s149
          %s151 = smul.u32 8, %s143
          %s152 = sshll.u32 %s150, 4
          %s153 = int_to_ptr.hbm [resolvable:$true] %s152
          %s154 = sshll.u32 %s139, 4
          %s155 = int_to_ptr.vmem [resolvable:$true] %s154
          %s156 = sshll.u32 %s151, 4
          %160 = dma.hbm_to_vmem [thread:$0]  (%p148), %s153, %s156, %s155, %s136, 128, 128, 8
        $region28: #{tpu_custom_call.1} parent=23 // pred_fallthru
          _
      $region24: #{tpu_custom_call.1} parent=5 // pred_fallthru
        _
      %p161 = scmp.le.s32.totalorder 1, %s13
      %p162 = scmp.lt.s32.totalorder %s13, 5
      %p163 = pnand %p161, %p162
      %p164 = pneg %p163
      // Predicated region
      $region29: #{tpu_custom_call.1} parent=5 // pred_check
        _
      $region30: #{tpu_custom_call.1} parent=5 // pred_check_branch
        %166 = sbr.rel (%p163) target = $region32
      $region31: #{tpu_custom_call.1} parent=5 // pred_region
        %s167 = ssub.s32 %s13, 1
        %s168 = sand.u32 %s26, 1
        %s169 = scalar_lea.sflag [#allocation4], %s168
        %s170 = sand.u32 %s26, 1
        %s171 = smul.addr %s170, 136
        %s172 = scalar_lea.vmem [#allocation3], %s171
        // Predicated region
        $region33: #{tpu_custom_call.1} parent=31 // pred_check
          %p173 = pneg %p39
        $region34: #{tpu_custom_call.1} parent=31 // pred_check_branch
          %175 = sbr.rel (%p173) target = $region36
        $region35: #{tpu_custom_call.1} parent=31 // pred_region
          %177 = dma.done %s169, 2176
        $region36: #{tpu_custom_call.1} parent=31 // pred_fallthru
          _
        %s178 = sand.u32 %s26, 1
        %s179 = scalar_lea.sflag [#allocation4], %s178
        %s180 = sand.u32 %s26, 1
        %s181 = smul.addr %s180, 136
        %s182 = scalar_lea.vmem [#allocation3], %s181
        %p183 = pneg %p39
        %p184 = pneg %p36
        %p185 = pneg %p60
        %p186 = pneg %p57
        %p187 = pneg %p81
        %p188 = pneg %p78
        %p189 = pneg %p107
        %p190 = pneg %p104
        %s191 = sand.u32 %s94, 1
        %s192 = sand.u32 %s94, 1
        %s193 = smul.addr %s192, 136
        %s194 = scalar_lea.vmem [#allocation5], %s193
        %s195 = smul.u32 17, %s18
        %s196 = ssub.s32 65, %s195
        %p197 = scmp.lt.s32.totalorder %s196, 17
        %s198 = scalar_select %p197, %s196, 17
        %s199 = smul.u32 8, %s198
        %s200 = smul.u32 17, %s18
        %s201 = ssub.s32 65, %s200
        %p202 = scmp.lt.s32.totalorder %s201, 17
        %s203 = scalar_select %p202, %s201, 17
        %s204 = smul.u32 8, %s203
        %v205 = vld [vmem:[%s172] sm:$0xff]
        %v206 = vld [vmem:[%s172 + $0x8] sm:$0xff]
        %v207 = vld [vmem:[%s172 + $0x10] sm:$0xff]
        %v208 = vld [vmem:[%s172 + $0x18] sm:$0xff]
        %v209 = vld [vmem:[%s172 + $0x20] sm:$0xff]
        %v210 = vld [vmem:[%s172 + $0x28] sm:$0xff]
        %v211 = vld [vmem:[%s172 + $0x30] sm:$0xff]
        %v212 = vld [vmem:[%s172 + $0x38] sm:$0xff]
        %v213 = vld [vmem:[%s172 + $0x40] sm:$0xff]
        %v214 = vld [vmem:[%s172 + $0x48] sm:$0xff]
        %v215 = vld [vmem:[%s172 + $0x50] sm:$0xff]
        %v216 = vld [vmem:[%s172 + $0x58] sm:$0xff]
        %v217 = vld [vmem:[%s172 + $0x60] sm:$0xff]
        %v218 = vld [vmem:[%s172 + $0x68] sm:$0xff]
        %v219 = vld [vmem:[%s172 + $0x70] sm:$0xff]
        %v220 = vld [vmem:[%s172 + $0x78] sm:$0xff]
        %v221 = vld [vmem:[%s172 + $0x80] sm:$0xff]
        %v222 = vld [vmem:[%s1] sm:$0xff]
        %v223 = vld [vmem:[%s1 + $0x8] sm:$0xff]
        %v224 = vld [vmem:[%s1 + $0x10] sm:$0xff]
        %v225 = vld [vmem:[%s1 + $0x18] sm:$0xff]
        %v226 = vld [vmem:[%s1 + $0x20] sm:$0xff]
        %v227 = vld [vmem:[%s1 + $0x28] sm:$0xff]
        %v228 = vld [vmem:[%s1 + $0x30] sm:$0xff]
        %v229 = vld [vmem:[%s1 + $0x38] sm:$0xff]
        %v230 = vld [vmem:[%s1 + $0x40] sm:$0xff]
        %v231 = vld [vmem:[%s1 + $0x48] sm:$0xff]
        %v232 = vld [vmem:[%s1 + $0x50] sm:$0xff]
        %v233 = vld [vmem:[%s1 + $0x58] sm:$0xff]
        %v234 = vld [vmem:[%s1 + $0x60] sm:$0xff]
        %v235 = vld [vmem:[%s1 + $0x68] sm:$0xff]
        %v236 = vld [vmem:[%s1 + $0x70] sm:$0xff]
        %v237 = vld [vmem:[%s1 + $0x78] sm:$0xff]
        %s238 = sld [smem:[#allocation2]]
        %v239 = vstv %s238
        %240 = vmatpush.msra.mxu0 %v237
        %241 = vmatpush.msra.mxu0 %v236
        %242 = vmatpush.msra.mxu0 %v235
        %243 = vmatpush.msra.mxu0 %v234
        %244 = vmatpush.msra.mxu0 %v233
        %245 = vmatpush.msra.mxu0 %v232
        %246 = vmatpush.msra.mxu0 %v231
        %247 = vmatpush.msra.mxu0 %v230
        %248 = vmatpush.msra.mxu0 %v229
        %249 = vmatpush.msra.mxu0 %v228
        %250 = vmatpush.msra.mxu0 %v227
        %251 = vmatpush.msra.mxu0 %v226
        %252 = vmatpush.msra.mxu0 %v225
        %253 = vmatpush.msra.mxu0 %v224
        %254 = vmatpush.msra.mxu0 %v223
        %255 = vmatpush.msra.mxu0 %v222
        %256 = vmatmul.f32.gmra.mxu0 %v205
        %v257 = vpop.f32.mrf.mxu0
        %v258 = vadd.f32 %v239, %v257
        %259 = vmatmul.f32.gmra.mxu0 %v206
        %v260 = vpop.f32.mrf.mxu0
        %v261 = vadd.f32 %v239, %v260
        %262 = vmatmul.f32.gmra.mxu0 %v207
        %v263 = vpop.f32.mrf.mxu0
        %v264 = vadd.f32 %v239, %v263
        %265 = vmatmul.f32.gmra.mxu0 %v208
        %v266 = vpop.f32.mrf.mxu0
        %v267 = vadd.f32 %v239, %v266
        %268 = vmatmul.f32.gmra.mxu0 %v209
        %v269 = vpop.f32.mrf.mxu0
        %v270 = vadd.f32 %v239, %v269
        %271 = vmatmul.f32.gmra.mxu0 %v210
        %v272 = vpop.f32.mrf.mxu0
        %v273 = vadd.f32 %v239, %v272
        %274 = vmatmul.f32.gmra.mxu0 %v211
        %v275 = vpop.f32.mrf.mxu0
        %v276 = vadd.f32 %v239, %v275
        %277 = vmatmul.f32.gmra.mxu0 %v212
        %v278 = vpop.f32.mrf.mxu0
        %v279 = vadd.f32 %v239, %v278
        %280 = vmatmul.f32.gmra.mxu0 %v213
        %v281 = vpop.f32.mrf.mxu0
        %v282 = vadd.f32 %v239, %v281
        %283 = vmatmul.f32.gmra.mxu0 %v214
        %v284 = vpop.f32.mrf.mxu0
        %v285 = vadd.f32 %v239, %v284
        %286 = vmatmul.f32.gmra.mxu0 %v215
        %v287 = vpop.f32.mrf.mxu0
        %v288 = vadd.f32 %v239, %v287
        %289 = vmatmul.f32.gmra.mxu0 %v216
        %v290 = vpop.f32.mrf.mxu0
        %v291 = vadd.f32 %v239, %v290
        %292 = vmatmul.f32.gmra.mxu0 %v217
        %v293 = vpop.f32.mrf.mxu0
        %v294 = vadd.f32 %v239, %v293
        %295 = vmatmul.f32.gmra.mxu0 %v218
        %v296 = vpop.f32.mrf.mxu0
        %v297 = vadd.f32 %v239, %v296
        %298 = vmatmul.f32.gmra.mxu0 %v219
        %v299 = vpop.f32.mrf.mxu0
        %v300 = vadd.f32 %v239, %v299
        %301 = vmatmul.f32.gmra.mxu0 %v220
        %v302 = vpop.f32.mrf.mxu0
        %v303 = vadd.f32 %v239, %v302
        %304 = vmatmul.f32.gmra.mxu0 %v221
        %v305 = vpop.f32.mrf.mxu0
        %v306 = vadd.f32 %v239, %v305
        %307 = vdwg.mxu0
        %vm308 = vcmask 31744
        %309 = vst.msk [vmem:[%s194] sm:$0xff] %vm308, %v258
        %310 = vst.msk [vmem:[%s194 + $0x8] sm:$0xff] %vm308, %v261
        %311 = vst.msk [vmem:[%s194 + $0x10] sm:$0xff] %vm308, %v264
        %312 = vst.msk [vmem:[%s194 + $0x18] sm:$0xff] %vm308, %v267
        %313 = vst.msk [vmem:[%s194 + $0x20] sm:$0xff] %vm308, %v270
        %314 = vst.msk [vmem:[%s194 + $0x28] sm:$0xff] %vm308, %v273
        %315 = vst.msk [vmem:[%s194 + $0x30] sm:$0xff] %vm308, %v276
        %316 = vst.msk [vmem:[%s194 + $0x38] sm:$0xff] %vm308, %v279
        %317 = vst.msk [vmem:[%s194 + $0x40] sm:$0xff] %vm308, %v282
        %318 = vst.msk [vmem:[%s194 + $0x48] sm:$0xff] %vm308, %v285
        %319 = vst.msk [vmem:[%s194 + $0x50] sm:$0xff] %vm308, %v288
        %320 = vst.msk [vmem:[%s194 + $0x58] sm:$0xff] %vm308, %v291
        %321 = vst.msk [vmem:[%s194 + $0x60] sm:$0xff] %vm308, %v294
        %322 = vst.msk [vmem:[%s194 + $0x68] sm:$0xff] %vm308, %v297
        %323 = vst.msk [vmem:[%s194 + $0x70] sm:$0xff] %vm308, %v300
        %324 = vst.msk [vmem:[%s194 + $0x78] sm:$0xff] %vm308, %v303
        %325 = vst.msk [vmem:[%s194 + $0x80] sm:$0xff] %vm308, %v306
        %s326 = sand.u32 %s94, 1
        %s327 = sand.u32 %s94, 1
        %s328 = smul.addr %s327, 136
        %s329 = scalar_lea.vmem [#allocation5], %s328
        // Predicated region
        $region37: #{tpu_custom_call.1} parent=31 // pred_check
          %p330 = pneg %p104
        $region38: #{tpu_custom_call.1} parent=31 // pred_check_branch
          %332 = sbr.rel (%p330) target = $region40
        $region39: #{tpu_custom_call.1} parent=31 // pred_region
          %s333 = smul.u32 17, %s18
          %s334 = ssub.s32 65, %s333
          %p335 = scmp.lt.s32.totalorder %s334, 17
          %s336 = scalar_select %p335, %s334, 17
          %s337 = smul.u32 8, %s336
          %p338 = scmp.ne.s32.totalorder 0, %s337
          %s339 = smul.addr %s333, 8
          %s340 = scalar_lea.vmem %s3, %s339
          // Predicated region
          $region41: #{tpu_custom_call.1} parent=39 // pred_check
            %p341 = pneg %p338
          $region42: #{tpu_custom_call.1} parent=39 // pred_check_branch
            %343 = sbr.rel (%p341) target = $region44
          $region43: #{tpu_custom_call.1} parent=39 // pred_region
            // Predicated region
            $region45: #{tpu_custom_call.1} parent=43 // pred_check
              _
            $region46: #{tpu_custom_call.1} parent=43 // pred_check_branch
              %345 = sbr.rel (0) target = $region48
            $region47: #{tpu_custom_call.1} parent=43 // pred_region
              // Predicated region
              $region67: #{tpu_custom_call.1} parent=47 // pred_check
                _
              $region68: #{tpu_custom_call.1} parent=47 // pred_check_branch
                %428 = sbr.rel (0) target = $region70
              $region69: #{tpu_custom_call.1} parent=47 // pred_region
                %s429 = sdiv.u32.pop %s336, 17
                %s430 = srem.u32.pop %s336, 17
                // While loop
                $region71: #{tpu_custom_call.1} parent=69 // loop_pre_header
                  _
                $region72: #{tpu_custom_call.1} parent=69 // loop_header
                  %s432 = sphi 0, %s434
                  %p433 = scmp.ge.s32.totalorder %s432, %s429
                  %s437 = sphi 0, %s476
                  %s438 = sphi %s329, %s479
                  %s439 = sphi %s340, %s480
                $region73: #{tpu_custom_call.1} parent=69 // loop_header_branch
                  %436 = sbr.rel (%p433) target = $region77
                $region74: #{tpu_custom_call.1} parent=69 // loop_body
                  %v440 = vld [vmem:[%s438] sm:$0xff]
                  %441 = vst [vmem:[%s439] sm:$0xff] %v440
                  %v442 = vld [vmem:[%s438 + $0x8] sm:$0xff]
                  %443 = vst [vmem:[%s439 + $0x8] sm:$0xff] %v442
                  %v444 = vld [vmem:[%s438 + $0x10] sm:$0xff]
                  %445 = vst [vmem:[%s439 + $0x10] sm:$0xff] %v444
                  %v446 = vld [vmem:[%s438 + $0x18] sm:$0xff]
                  %447 = vst [vmem:[%s439 + $0x18] sm:$0xff] %v446
                  %v448 = vld [vmem:[%s438 + $0x20] sm:$0xff]
                  %449 = vst [vmem:[%s439 + $0x20] sm:$0xff] %v448
                  %v450 = vld [vmem:[%s438 + $0x28] sm:$0xff]
                  %451 = vst [vmem:[%s439 + $0x28] sm:$0xff] %v450
                  %v452 = vld [vmem:[%s438 + $0x30] sm:$0xff]
                  %453 = vst [vmem:[%s439 + $0x30] sm:$0xff] %v452
                  %v454 = vld [vmem:[%s438 + $0x38] sm:$0xff]
                  %455 = vst [vmem:[%s439 + $0x38] sm:$0xff] %v454
                  %v456 = vld [vmem:[%s438 + $0x40] sm:$0xff]
                  %457 = vst [vmem:[%s439 + $0x40] sm:$0xff] %v456
                  %v458 = vld [vmem:[%s438 + $0x48] sm:$0xff]
                  %459 = vst [vmem:[%s439 + $0x48] sm:$0xff] %v458
                  %v460 = vld [vmem:[%s438 + $0x50] sm:$0xff]
                  %461 = vst [vmem:[%s439 + $0x50] sm:$0xff] %v460
                  %v462 = vld [vmem:[%s438 + $0x58] sm:$0xff]
                  %463 = vst [vmem:[%s439 + $0x58] sm:$0xff] %v462
                  %v464 = vld [vmem:[%s438 + $0x60] sm:$0xff]
                  %465 = vst [vmem:[%s439 + $0x60] sm:$0xff] %v464
                  %v466 = vld [vmem:[%s438 + $0x68] sm:$0xff]
                  %467 = vst [vmem:[%s439 + $0x68] sm:$0xff] %v466
                  %v468 = vld [vmem:[%s438 + $0x70] sm:$0xff]
                  %469 = vst [vmem:[%s439 + $0x70] sm:$0xff] %v468
                  %v470 = vld [vmem:[%s438 + $0x78] sm:$0xff]
                  %471 = vst [vmem:[%s439 + $0x78] sm:$0xff] %v470
                  %v472 = vld [vmem:[%s438 + $0x80] sm:$0xff]
                  %473 = vst [vmem:[%s439 + $0x80] sm:$0xff] %v472
                  %s474 = sadd.s32 1, %s437
                  %p475 = scmp.ge.s32.totalorder %s474, %s429
                  %s476 = scalar_select %p475, 0, %s474
                  %s477 = smul.u32 %s476, 136
                  %s478 = smul.u32 %s476, 136
                  %s479 = scalar_lea.vmem %s329, %s477 [#allocation5]
                  %s480 = scalar_lea.vmem %s340, %s478
                $region75: #{tpu_custom_call.1} parent=69 // loop_footer
                  %s434 = sadd.s32 %s432, 1
                $region76: #{tpu_custom_call.1} parent=69 // loop_footer_branch
                  %431 = sbr.rel target = $region72
                $region77: #{tpu_custom_call.1} parent=69 // loop_exit
                  _
                %s481 = sdiv.u32.pop %s336, 17
                %s482 = srem.u32.pop %s336, 17
                %s483 = smul.u32 %s481, 17
                %s484 = smul.u32 8, %s483
                %s485 = scalar_lea.vmem %s329, %s484 [#allocation5]
                %s486 = smul.u32 8, %s483
                %s487 = scalar_lea.vmem %s340, %s486
                // While loop
                $region78: #{tpu_custom_call.1} parent=69 // loop_pre_header
                  _
                $region79: #{tpu_custom_call.1} parent=69 // loop_header
                  %s489 = sphi 0, %s491
                  %p490 = scmp.ge.s32.totalorder %s489, %s482
                  %s494 = sphi 0, %s501
                  %s495 = sphi %s485, %s504
                  %s496 = sphi %s487, %s505
                $region80: #{tpu_custom_call.1} parent=69 // loop_header_branch
                  %493 = sbr.rel (%p490) target = $region84
                $region81: #{tpu_custom_call.1} parent=69 // loop_body
                  %v497 = vld [vmem:[%s495] sm:$0xff]
                  %498 = vst [vmem:[%s496] sm:$0xff] %v497
                  %s499 = sadd.s32 1, %s494
                  %p500 = scmp.ge.s32.totalorder %s499, %s482
                  %s501 = scalar_select %p500, 0, %s499
                  %s502 = smul.u32 %s501, 8
                  %s503 = smul.u32 %s501, 8
                  %s504 = scalar_lea.vmem %s485, %s502 [#allocation5]
                  %s505 = scalar_lea.vmem %s487, %s503
                $region82: #{tpu_custom_call.1} parent=69 // loop_footer
                  %s491 = sadd.s32 %s489, 1
                $region83: #{tpu_custom_call.1} parent=69 // loop_footer_branch
                  %488 = sbr.rel target = $region79
                $region84: #{tpu_custom_call.1} parent=69 // loop_exit
                  _
              $region70: #{tpu_custom_call.1} parent=47 // pred_fallthru
                _
              // Predicated region
              $region85: #{tpu_custom_call.1} parent=47 // pred_check
                _
              $region86: #{tpu_custom_call.1} parent=47 // pred_check_branch
                %507 = sbr.rel target = $region88
              $region87: #{tpu_custom_call.1} parent=47 // pred_region
                _
              $region88: #{tpu_custom_call.1} parent=47 // pred_fallthru
                _
            $region48: #{tpu_custom_call.1} parent=43 // pred_fallthru
              _
            // Predicated region
            $region49: #{tpu_custom_call.1} parent=43 // pred_check
              _
            $region50: #{tpu_custom_call.1} parent=43 // pred_check_branch
              %347 = sbr.rel target = $region52
            $region51: #{tpu_custom_call.1} parent=43 // pred_region
              %s349 = ssub.s32 256, 1
              %s350 = sdiv.u32.pop %s336, 17
              %s351 = srem.u32.pop %s336, 17
              // While loop
              $region53: #{tpu_custom_call.1} parent=51 // loop_pre_header
                _
              $region54: #{tpu_custom_call.1} parent=51 // loop_header
                %s353 = sphi 0, %s355
                %p354 = scmp.ge.s32.totalorder %s353, %s350
                %s358 = sphi 0, %s397
                %s359 = sphi %s329, %s400
                %s360 = sphi %s340, %s401
              $region55: #{tpu_custom_call.1} parent=51 // loop_header_branch
                %357 = sbr.rel (%p354) target = $region59
              $region56: #{tpu_custom_call.1} parent=51 // loop_body
                %v361 = vld [vmem:[%s359] sm:%s349]
                %362 = vst [vmem:[%s360] sm:%s349] %v361
                %v363 = vld [vmem:[%s359 + $0x8] sm:%s349]
                %364 = vst [vmem:[%s360 + $0x8] sm:%s349] %v363
                %v365 = vld [vmem:[%s359 + $0x10] sm:%s349]
                %366 = vst [vmem:[%s360 + $0x10] sm:%s349] %v365
                %v367 = vld [vmem:[%s359 + $0x18] sm:%s349]
                %368 = vst [vmem:[%s360 + $0x18] sm:%s349] %v367
                %v369 = vld [vmem:[%s359 + $0x20] sm:%s349]
                %370 = vst [vmem:[%s360 + $0x20] sm:%s349] %v369
                %v371 = vld [vmem:[%s359 + $0x28] sm:%s349]
                %372 = vst [vmem:[%s360 + $0x28] sm:%s349] %v371
                %v373 = vld [vmem:[%s359 + $0x30] sm:%s349]
                %374 = vst [vmem:[%s360 + $0x30] sm:%s349] %v373
                %v375 = vld [vmem:[%s359 + $0x38] sm:%s349]
                %376 = vst [vmem:[%s360 + $0x38] sm:%s349] %v375
                %v377 = vld [vmem:[%s359 + $0x40] sm:%s349]
                %378 = vst [vmem:[%s360 + $0x40] sm:%s349] %v377
                %v379 = vld [vmem:[%s359 + $0x48] sm:%s349]
                %380 = vst [vmem:[%s360 + $0x48] sm:%s349] %v379
                %v381 = vld [vmem:[%s359 + $0x50] sm:%s349]
                %382 = vst [vmem:[%s360 + $0x50] sm:%s349] %v381
                %v383 = vld [vmem:[%s359 + $0x58] sm:%s349]
                %384 = vst [vmem:[%s360 + $0x58] sm:%s349] %v383
                %v385 = vld [vmem:[%s359 + $0x60] sm:%s349]
                %386 = vst [vmem:[%s360 + $0x60] sm:%s349] %v385
                %v387 = vld [vmem:[%s359 + $0x68] sm:%s349]
                %388 = vst [vmem:[%s360 + $0x68] sm:%s349] %v387
                %v389 = vld [vmem:[%s359 + $0x70] sm:%s349]
                %390 = vst [vmem:[%s360 + $0x70] sm:%s349] %v389
                %v391 = vld [vmem:[%s359 + $0x78] sm:%s349]
                %392 = vst [vmem:[%s360 + $0x78] sm:%s349] %v391
                %v393 = vld [vmem:[%s359 + $0x80] sm:%s349]
                %394 = vst [vmem:[%s360 + $0x80] sm:%s349] %v393
                %s395 = sadd.s32 1, %s358
                %p396 = scmp.ge.s32.totalorder %s395, %s350
                %s397 = scalar_select %p396, 0, %s395
                %s398 = smul.u32 %s397, 136
                %s399 = smul.u32 %s397, 136
                %s400 = scalar_lea.vmem %s329, %s398 [#allocation5]
                %s401 = scalar_lea.vmem %s340, %s399
              $region57: #{tpu_custom_call.1} parent=51 // loop_footer
                %s355 = sadd.s32 %s353, 1
              $region58: #{tpu_custom_call.1} parent=51 // loop_footer_branch
                %352 = sbr.rel target = $region54
              $region59: #{tpu_custom_call.1} parent=51 // loop_exit
                _
              %s402 = sdiv.u32.pop %s336, 17
              %s403 = srem.u32.pop %s336, 17
              %s404 = smul.u32 %s402, 17
              %s405 = smul.u32 8, %s404
              %s406 = scalar_lea.vmem %s329, %s405 [#allocation5]
              %s407 = smul.u32 8, %s404
              %s408 = scalar_lea.vmem %s340, %s407
              // While loop
              $region60: #{tpu_custom_call.1} parent=51 // loop_pre_header
                _
              $region61: #{tpu_custom_call.1} parent=51 // loop_header
                %s410 = sphi 0, %s412
                %p411 = scmp.ge.s32.totalorder %s410, %s403
                %s415 = sphi 0, %s422
                %s416 = sphi %s406, %s425
                %s417 = sphi %s408, %s426
              $region62: #{tpu_custom_call.1} parent=51 // loop_header_branch
                %414 = sbr.rel (%p411) target = $region66
              $region63: #{tpu_custom_call.1} parent=51 // loop_body
                %v418 = vld [vmem:[%s416] sm:%s349]
                %419 = vst [vmem:[%s417] sm:%s349] %v418
                %s420 = sadd.s32 1, %s415
                %p421 = scmp.ge.s32.totalorder %s420, %s403
                %s422 = scalar_select %p421, 0, %s420
                %s423 = smul.u32 %s422, 8
                %s424 = smul.u32 %s422, 8
                %s425 = scalar_lea.vmem %s406, %s423 [#allocation5]
                %s426 = scalar_lea.vmem %s408, %s424
              $region64: #{tpu_custom_call.1} parent=51 // loop_footer
                %s412 = sadd.s32 %s410, 1
              $region65: #{tpu_custom_call.1} parent=51 // loop_footer_branch
                %409 = sbr.rel target = $region61
              $region66: #{tpu_custom_call.1} parent=51 // loop_exit
                _
            $region52: #{tpu_custom_call.1} parent=43 // pred_fallthru
              _
          $region44: #{tpu_custom_call.1} parent=39 // pred_fallthru
            _
          %508 = vnop
        $region40: #{tpu_custom_call.1} parent=31 // pred_fallthru
          _
      $region32: #{tpu_custom_call.1} parent=5 // pred_fallthru
        _
      %p509 = scmp.le.s32.totalorder 2, %s13
      // Predicated region
      $region89: #{tpu_custom_call.1} parent=5 // pred_check
        %p510 = pneg %p509
      $region90: #{tpu_custom_call.1} parent=5 // pred_check_branch
        %512 = sbr.rel (%p510) target = $region92
      $region91: #{tpu_custom_call.1} parent=5 // pred_region
        %s513 = ssub.s32 %s13, 2
        // Predicated region
        $region93: #{tpu_custom_call.1} parent=91 // pred_check
          %p514 = pneg %p110
        $region94: #{tpu_custom_call.1} parent=91 // pred_check_branch
          %516 = sbr.rel (%p514) target = $region96
        $region95: #{tpu_custom_call.1} parent=91 // pred_region
          %s517 = sand.u32 %s95, 1
          %s518 = sand.u32 %s95, 1
          %s519 = smul.addr %s518, 136
          %s520 = scalar_lea.vmem [#allocation5], %s519
        $region96: #{tpu_custom_call.1} parent=91 // pred_fallthru
          _
      $region92: #{tpu_custom_call.1} parent=5 // pred_fallthru
        _
    $region6: #{tpu_custom_call.1} parent=1 // loop_footer
      %s17 = sadd.s32 1, %s13
    $region7: #{tpu_custom_call.1} parent=1 // loop_footer_branch
      %12 = sbr.rel target = $region3
    $region8: #{tpu_custom_call.1} parent=1 // loop_exit
      _
    %521 = vsyncpa [#allocation4], 1
    %s522 = scalar_lea.sflag [#allocation4], 1
    %523 = vsyncpa %s522, 1

</llo_original>
